<compile_context>
chip_gen: v5e
topology: v5e:2x2
jax: 0.10.0
libtpu: 0.0.40
codegen_flags: <defaults>
</compile_context>

<pallas_src>
import jax
import jax.numpy as jnp
from jax.experimental import pallas as pl
from jax.experimental.pallas import tpu as pltpu

NEURONS = 16        # neurons_per_layer
NUM_LAYERS = 4
IN_FEATURES = 4
OUT_FEATURES = 1
TB = 1024           # batch tile on the lane axis: (16, TB) f32 activation = 32 vregs


def _mlp_kernel(x_ref,
                w0_ref, b0_ref,
                w1_ref, b1_ref,
                w2_ref, b2_ref,
                w3_ref, b3_ref,
                w4_ref, b4_ref,
                o_ref):
    """Full MLP forward for one batch tile, entirely in VMEM.

    Layout: activations are (features, TB) so batch maps to lanes.
    Hidden layers: h = relu(W_i @ h + b_i); final layer has no ReLU.
    All matmuls accumulate in f32 on the MXU; elementwise math is f32.
    """
    h = x_ref[...]  # (IN_FEATURES, TB) f32

    def dense(w_ref, b_ref, h):
        # (out, in) @ (in, TB) + (out, 1)  ->  (out, TB)
        return jnp.dot(w_ref[...], h, preferred_element_type=jnp.float32) + b_ref[...]

    h = jnp.maximum(dense(w0_ref, b0_ref, h), 0.0)
    h = jnp.maximum(dense(w1_ref, b1_ref, h), 0.0)
    h = jnp.maximum(dense(w2_ref, b2_ref, h), 0.0)
    h = jnp.maximum(dense(w3_ref, b3_ref, h), 0.0)
    o_ref[...] = dense(w4_ref, b4_ref, h).astype(o_ref.dtype)


def relevance_model_forward(x, params, tb=TB):
    """x: (B, 4) float32 (PyTorch row layout).
    params: list of 5 (W, b) with W in PyTorch-native (out, in) layout and b as (out, 1).
    Returns (B, 1) float32.
    """
    B = x.shape[0]
    B_pad = ((B + tb - 1) // tb) * tb

    # Present batch on the lane axis: (4, B_pad). Padded columns produce junk
    # (bias + ReLU) but are sliced off before returning.
    xt = x.astype(jnp.float32).T                      # (4, B)
    if B_pad != B:
        xt = jnp.pad(xt, ((0, 0), (0, B_pad - B)))    # (4, B_pad)
    # TODO(synk): for very large ragged B, replace this pad copy with a clamped
    # last-block index_map to avoid the extra HBM pass over x.

    grid = (B_pad // tb,)

    # x / output tiled along the lane (batch) axis; weights & biases are
    # full-array blocks, resident in VMEM for every grid step.
    x_spec = pl.BlockSpec((IN_FEATURES, tb), lambda i: (0, i))
    out_spec = pl.BlockSpec((OUT_FEATURES, tb), lambda i: (0, i))

    param_specs = []
    flat_params = []
    for (w, b) in params:
        param_specs.append(pl.BlockSpec(w.shape, lambda i: (0, 0)))
        param_specs.append(pl.BlockSpec(b.shape, lambda i: (0, 0)))
        flat_params.append(w)
        flat_params.append(b)

    out = pl.pallas_call(
        _mlp_kernel,
        out_shape=jax.ShapeDtypeStruct((OUT_FEATURES, B_pad), jnp.float32),
        grid_spec=pl.GridSpec(
            grid=grid,
            in_specs=[x_spec] + param_specs,
            out_specs=out_spec,
        ),
        compiler_params=pltpu.CompilerParams(
            dimension_semantics=("parallel",)),
    )(xt, *flat_params)

    return out[:, :B].T  # (B, 1)


def init_params(key):
    """Deterministic init mimicking nn.Linear default (uniform +/- 1/sqrt(fan_in)).

    Weights kept in PyTorch-native (out_features, in_features) layout; biases as
    (out_features, 1) so they broadcast against (out, TB) activations.
    """
    dims = [IN_FEATURES] + [NEURONS] * NUM_LAYERS + [OUT_FEATURES]
    params = []
    for li in range(len(dims) - 1):
        fan_in, fan_out = dims[li], dims[li + 1]
        key, kw, kb = jax.random.split(key, 3)
        bound = 1.0 / (fan_in ** 0.5)
        w = jax.random.uniform(kw, (fan_out, fan_in), jnp.float32, -bound, bound)
        b = jax.random.uniform(kb, (fan_out, 1), jnp.float32, -bound, bound)
        params.append((w, b))
    return params


def reference_forward(x, params):
    """Pure-JAX reference in standard PyTorch orientation: y = x @ W^T + b^T."""
    h = x
    for (w, b) in params[:-1]:
        h = jnp.maximum(h @ w.T + b.T, 0.0)
    w, b = params[-1]
    return h @ w.T + b.T


if __name__ == "__main__":
    key = jax.random.PRNGKey(0)
    key, kx1, kx2 = jax.random.split(key, 3)
    params = init_params(key)

    # Small shape consistent with the module: (batch, 4) features.
    B = 8
    x = jax.random.normal(kx1, (B, IN_FEATURES), jnp.float32)
    out = jax.block_until_ready(relevance_model_forward(x, params))
    ref = reference_forward(x, params)
    assert out.shape == (B, OUT_FEATURES), out.shape
    assert jnp.allclose(out, ref, atol=1e-5, rtol=1e-5)

    # Second check: multi-step grid (>=2 steps for v7x's two TCs) + ragged tail.
    B2 = 2500
    x2 = jax.random.normal(kx2, (B2, IN_FEATURES), jnp.float32)
    out2 = jax.block_until_ready(relevance_model_forward(x2, params))
    ref2 = reference_forward(x2, params)
    assert out2.shape == (B2, OUT_FEATURES), out2.shape
    assert jnp.allclose(out2, ref2, atol=1e-5, rtol=1e-5)

    print("KERNEL_OK")
</pallas_src>

<mosaic_0001>
module attributes {stable_mosaic.version = 11 : i64} {
  func.func @_mlp_kernel(%arg0: i32, %arg1: memref<4x1024xf32, #tpu.memory_space<vmem>>, %arg2: memref<16x4xf32, #tpu.memory_space<vmem>>, %arg3: memref<16x1xf32, #tpu.memory_space<vmem>>, %arg4: memref<16x16xf32, #tpu.memory_space<vmem>>, %arg5: memref<16x1xf32, #tpu.memory_space<vmem>>, %arg6: memref<16x16xf32, #tpu.memory_space<vmem>>, %arg7: memref<16x1xf32, #tpu.memory_space<vmem>>, %arg8: memref<16x16xf32, #tpu.memory_space<vmem>>, %arg9: memref<16x1xf32, #tpu.memory_space<vmem>>, %arg10: memref<1x16xf32, #tpu.memory_space<vmem>>, %arg11: memref<1x1xf32, #tpu.memory_space<vmem>>, %arg12: memref<1x1024xf32, #tpu.memory_space<vmem>>) attributes {dimension_semantics = [#tpu.dimension_semantics<parallel>], iteration_bounds = array<i64: 1>, scalar_prefetch = 0 : i64, scratch_operands = 0 : i64, tpu.core_type = #tpu.core_type<tc>, window_params = [{transform_indices = @transform_0, window_bounds = array<i64: 4, 1024>}, {pipeline_mode = #tpu.pipeline_mode<synchronous>, transform_indices = @transform_1, window_bounds = array<i64: 16, 4>}, {pipeline_mode = #tpu.pipeline_mode<synchronous>, transform_indices = @transform_2, window_bounds = array<i64: 16, 1>}, {pipeline_mode = #tpu.pipeline_mode<synchronous>, transform_indices = @transform_3, window_bounds = array<i64: 16, 16>}, {pipeline_mode = #tpu.pipeline_mode<synchronous>, transform_indices = @transform_4, window_bounds = array<i64: 16, 1>}, {pipeline_mode = #tpu.pipeline_mode<synchronous>, transform_indices = @transform_5, window_bounds = array<i64: 16, 16>}, {pipeline_mode = #tpu.pipeline_mode<synchronous>, transform_indices = @transform_6, window_bounds = array<i64: 16, 1>}, {pipeline_mode = #tpu.pipeline_mode<synchronous>, transform_indices = @transform_7, window_bounds = array<i64: 16, 16>}, {pipeline_mode = #tpu.pipeline_mode<synchronous>, transform_indices = @transform_8, window_bounds = array<i64: 16, 1>}, {pipeline_mode = #tpu.pipeline_mode<synchronous>, transform_indices = @transform_9, window_bounds = array<i64: 1, 16>}, {pipeline_mode = #tpu.pipeline_mode<synchronous>, transform_indices = @transform_10, window_bounds = array<i64: 1, 1>}, {transform_indices = @transform_11, window_bounds = array<i64: 1, 1024>}]} {
    %c0 = arith.constant 0 : index
    %c0_0 = arith.constant 0 : index
    %0 = vector.load %arg1[%c0, %c0_0] : memref<4x1024xf32, #tpu.memory_space<vmem>>, vector<4x1024xf32>
    %c0_1 = arith.constant 0 : index
    %c0_2 = arith.constant 0 : index
    %1 = vector.load %arg2[%c0_1, %c0_2] : memref<16x4xf32, #tpu.memory_space<vmem>>, vector<16x4xf32>
    %cst = arith.constant dense<0.000000e+00> : vector<16x1024xf32>
    %2 = tpu.matmul %1, %0, %cst {dimension_numbers = #tpu.dot_dimension_numbers<[1], [0], [0], [1], [0, 0, 1, 1], [], []>} : vector<16x4xf32>, vector<4x1024xf32>, vector<16x1024xf32> -> vector<16x1024xf32>
    %c0_3 = arith.constant 0 : index
    %c0_4 = arith.constant 0 : index
    %3 = vector.load %arg3[%c0_3, %c0_4] : memref<16x1xf32, #tpu.memory_space<vmem>>, vector<16x1xf32>
    %4 = vector.broadcast %3 : vector<16x1xf32> to vector<16x1024xf32>
    %5 = arith.addf %2, %4 : vector<16x1024xf32>
    %cst_5 = arith.constant 0.000000e+00 : f32
    %6 = vector.broadcast %cst_5 : f32 to vector<16x1024xf32>
    %7 = arith.maximumf %5, %6 : vector<16x1024xf32>
    %c0_6 = arith.constant 0 : index
    %c0_7 = arith.constant 0 : index
    %8 = vector.load %arg4[%c0_6, %c0_7] : memref<16x16xf32, #tpu.memory_space<vmem>>, vector<16x16xf32>
    %cst_8 = arith.constant dense<0.000000e+00> : vector<16x1024xf32>
    %9 = tpu.matmul %8, %7, %cst_8 {dimension_numbers = #tpu.dot_dimension_numbers<[1], [0], [0], [1], [0, 0, 1, 1], [], []>} : vector<16x16xf32>, vector<16x1024xf32>, vector<16x1024xf32> -> vector<16x1024xf32>
    %c0_9 = arith.constant 0 : index
    %c0_10 = arith.constant 0 : index
    %10 = vector.load %arg5[%c0_9, %c0_10] : memref<16x1xf32, #tpu.memory_space<vmem>>, vector<16x1xf32>
    %11 = vector.broadcast %10 : vector<16x1xf32> to vector<16x1024xf32>
    %12 = arith.addf %9, %11 : vector<16x1024xf32>
    %cst_11 = arith.constant 0.000000e+00 : f32
    %13 = vector.broadcast %cst_11 : f32 to vector<16x1024xf32>
    %14 = arith.maximumf %12, %13 : vector<16x1024xf32>
    %c0_12 = arith.constant 0 : index
    %c0_13 = arith.constant 0 : index
    %15 = vector.load %arg6[%c0_12, %c0_13] : memref<16x16xf32, #tpu.memory_space<vmem>>, vector<16x16xf32>
    %cst_14 = arith.constant dense<0.000000e+00> : vector<16x1024xf32>
    %16 = tpu.matmul %15, %14, %cst_14 {dimension_numbers = #tpu.dot_dimension_numbers<[1], [0], [0], [1], [0, 0, 1, 1], [], []>} : vector<16x16xf32>, vector<16x1024xf32>, vector<16x1024xf32> -> vector<16x1024xf32>
    %c0_15 = arith.constant 0 : index
    %c0_16 = arith.constant 0 : index
    %17 = vector.load %arg7[%c0_15, %c0_16] : memref<16x1xf32, #tpu.memory_space<vmem>>, vector<16x1xf32>
    %18 = vector.broadcast %17 : vector<16x1xf32> to vector<16x1024xf32>
    %19 = arith.addf %16, %18 : vector<16x1024xf32>
    %cst_17 = arith.constant 0.000000e+00 : f32
    %20 = vector.broadcast %cst_17 : f32 to vector<16x1024xf32>
    %21 = arith.maximumf %19, %20 : vector<16x1024xf32>
    %c0_18 = arith.constant 0 : index
    %c0_19 = arith.constant 0 : index
    %22 = vector.load %arg8[%c0_18, %c0_19] : memref<16x16xf32, #tpu.memory_space<vmem>>, vector<16x16xf32>
    %cst_20 = arith.constant dense<0.000000e+00> : vector<16x1024xf32>
    %23 = tpu.matmul %22, %21, %cst_20 {dimension_numbers = #tpu.dot_dimension_numbers<[1], [0], [0], [1], [0, 0, 1, 1], [], []>} : vector<16x16xf32>, vector<16x1024xf32>, vector<16x1024xf32> -> vector<16x1024xf32>
    %c0_21 = arith.constant 0 : index
    %c0_22 = arith.constant 0 : index
    %24 = vector.load %arg9[%c0_21, %c0_22] : memref<16x1xf32, #tpu.memory_space<vmem>>, vector<16x1xf32>
    %25 = vector.broadcast %24 : vector<16x1xf32> to vector<16x1024xf32>
    %26 = arith.addf %23, %25 : vector<16x1024xf32>
    %cst_23 = arith.constant 0.000000e+00 : f32
    %27 = vector.broadcast %cst_23 : f32 to vector<16x1024xf32>
    %28 = arith.maximumf %26, %27 : vector<16x1024xf32>
    %c0_24 = arith.constant 0 : index
    %c0_25 = arith.constant 0 : index
    %29 = vector.load %arg10[%c0_24, %c0_25] : memref<1x16xf32, #tpu.memory_space<vmem>>, vector<1x16xf32>
    %cst_26 = arith.constant dense<0.000000e+00> : vector<1x1024xf32>
    %30 = tpu.matmul %29, %28, %cst_26 {dimension_numbers = #tpu.dot_dimension_numbers<[1], [0], [0], [1], [0, 0, 1, 1], [], []>} : vector<1x16xf32>, vector<16x1024xf32>, vector<1x1024xf32> -> vector<1x1024xf32>
    %c0_27 = arith.constant 0 : index
    %c0_28 = arith.constant 0 : index
    %31 = vector.load %arg11[%c0_27, %c0_28] : memref<1x1xf32, #tpu.memory_space<vmem>>, vector<1x1xf32>
    %32 = vector.broadcast %31 : vector<1x1xf32> to vector<1x1024xf32>
    %33 = arith.addf %30, %32 : vector<1x1024xf32>
    %c0_29 = arith.constant 0 : index
    %c0_30 = arith.constant 0 : index
    %34 = vector.load %arg12[%c0_29, %c0_30] : memref<1x1024xf32, #tpu.memory_space<vmem>>, vector<1x1024xf32>
    tpu.vector_store %arg12[%c0_29, %c0_30], %33 {strides = array<i32>} : memref<1x1024xf32, #tpu.memory_space<vmem>>, vector<1x1024xf32>,
    return
  }
  func.func @transform_0(%arg0: i32) -> (i32, i32) {
    %c0_i32 = arith.constant 0 : i32
    %c0_i32_0 = arith.constant 0 : i32
    return %c0_i32, %arg0 : i32, i32
  }
  func.func @transform_1(%arg0: i32) -> (i32, i32) {
    %c0_i32 = arith.constant 0 : i32
    %c0_i32_0 = arith.constant 0 : i32
    %c0_i32_1 = arith.constant 0 : i32
    return %c0_i32, %c0_i32_0 : i32, i32
  }
  func.func @transform_2(%arg0: i32) -> (i32, i32) {
    %c0_i32 = arith.constant 0 : i32
    %c0_i32_0 = arith.constant 0 : i32
    %c0_i32_1 = arith.constant 0 : i32
    return %c0_i32, %c0_i32_0 : i32, i32
  }
  func.func @transform_3(%arg0: i32) -> (i32, i32) {
    %c0_i32 = arith.constant 0 : i32
    %c0_i32_0 = arith.constant 0 : i32
    %c0_i32_1 = arith.constant 0 : i32
    return %c0_i32, %c0_i32_0 : i32, i32
  }
  func.func @transform_4(%arg0: i32) -> (i32, i32) {
    %c0_i32 = arith.constant 0 : i32
    %c0_i32_0 = arith.constant 0 : i32
    %c0_i32_1 = arith.constant 0 : i32
    return %c0_i32, %c0_i32_0 : i32, i32
  }
  func.func @transform_5(%arg0: i32) -> (i32, i32) {
    %c0_i32 = arith.constant 0 : i32
    %c0_i32_0 = arith.constant 0 : i32
    %c0_i32_1 = arith.constant 0 : i32
    return %c0_i32, %c0_i32_0 : i32, i32
  }
  func.func @transform_6(%arg0: i32) -> (i32, i32) {
    %c0_i32 = arith.constant 0 : i32
    %c0_i32_0 = arith.constant 0 : i32
    %c0_i32_1 = arith.constant 0 : i32
    return %c0_i32, %c0_i32_0 : i32, i32
  }
  func.func @transform_7(%arg0: i32) -> (i32, i32) {
    %c0_i32 = arith.constant 0 : i32
    %c0_i32_0 = arith.constant 0 : i32
    %c0_i32_1 = arith.constant 0 : i32
    return %c0_i32, %c0_i32_0 : i32, i32
  }
  func.func @transform_8(%arg0: i32) -> (i32, i32) {
    %c0_i32 = arith.constant 0 : i32
    %c0_i32_0 = arith.constant 0 : i32
    %c0_i32_1 = arith.constant 0 : i32
    return %c0_i32, %c0_i32_0 : i32, i32
  }
  func.func @transform_9(%arg0: i32) -> (i32, i32) {
    %c0_i32 = arith.constant 0 : i32
    %c0_i32_0 = arith.constant 0 : i32
    %c0_i32_1 = arith.constant 0 : i32
    return %c0_i32, %c0_i32_0 : i32, i32
  }
  func.func @transform_10(%arg0: i32) -> (i32, i32) {
    %c0_i32 = arith.constant 0 : i32
    %c0_i32_0 = arith.constant 0 : i32
    %c0_i32_1 = arith.constant 0 : i32
    return %c0_i32, %c0_i32_0 : i32, i32
  }
  func.func @transform_11(%arg0: i32) -> (i32, i32) {
    %c0_i32 = arith.constant 0 : i32
    %c0_i32_0 = arith.constant 0 : i32
    return %c0_i32, %arg0 : i32, i32
  }
}

</mosaic_0001>

<llo_original>
// kernel: tpu_custom_call.1
$region0: #{tpu_custom_call.1}
  #allocation0 [shape = 'u32[]', space=smem, size = 0x4, offset = 0x4, fixed_abs, tag = 'smem constant byte address 0x4 - core index']
  #allocation1 [shape = 'u32[72,128]{1,0:T(1,128)}', space=vmem, size = 0x9000, scoped, tag = 'internal scratch']
  #allocation2 [shape = 'f32[1,1]{1,0:T(1,128)S(1)}', space=vmem, size = 0x200, scoped, tag = 'scoped memory for tpu_custom_call.1']
  %s0 = inlined_call_operand.vmem [shape: f32[4,1024], index: 0, kind: input, shape index: {}]
  %s1 = inlined_call_operand.vmem [shape: f32[16,4], index: 1, kind: input, shape index: {}]
  %s2 = inlined_call_operand.vmem [shape: f32[16,1], index: 2, kind: input, shape index: {}]
  %s3 = inlined_call_operand.vmem [shape: f32[16,16], index: 3, kind: input, shape index: {}]
  %s4 = inlined_call_operand.vmem [shape: f32[16,1], index: 4, kind: input, shape index: {}]
  %s5 = inlined_call_operand.vmem [shape: f32[16,16], index: 5, kind: input, shape index: {}]
  %s6 = inlined_call_operand.vmem [shape: f32[16,1], index: 6, kind: input, shape index: {}]
  %s7 = inlined_call_operand.vmem [shape: f32[16,16], index: 7, kind: input, shape index: {}]
  %s8 = inlined_call_operand.vmem [shape: f32[16,1], index: 8, kind: input, shape index: {}]
  %s9 = inlined_call_operand.vmem [shape: f32[1,16], index: 9, kind: input, shape index: {}]
  %s10 = inlined_call_operand.<no memory space> [shape: f32[1,1], index: 10, kind: input, shape index: {}]
  %s11 = inlined_call_operand.hbm [shape: f32[1,1024], index: 11, kind: output, shape index: {}]
  %s12 = sld [smem:[#allocation0]]
  $region54: #{tpu_custom_call.1} parent=0
    _
  %s14 = ssub.s32 1, %s12
  %s15 = scalar_select 0, %s14, %s12
  %v16 = vstv %s10
  %17 = vst [vmem:[#allocation2] sm:$0x1] %v16
  $region1: #{tpu_custom_call.1} parent=0
    #allocation3 [shape = 'u8[4096]{0}', space=vmem, size = 0x1000, scoped, tag = 'output window, operand 0, single buffered']
    #allocation4 [shape = 's32[1]{0}', space=sflag, size = 0x4, scoped, tag = 'scoped memory for tpu_custom_call.1']
    %18 = vsyncpa [#allocation4], 0
    // Predicated region
    $region2: #{tpu_custom_call.1} parent=1 // pred_check
      _
    $region3: #{tpu_custom_call.1} parent=1 // pred_check_branch
      %20 = sbr.rel (0) target = $region5
    $region4: #{tpu_custom_call.1} parent=1 // pred_region
      _
    $region5: #{tpu_custom_call.1} parent=1 // pred_fallthru
      _
    // Predicated region
    $region6: #{tpu_custom_call.1} parent=1 // pred_check
      _
    $region7: #{tpu_custom_call.1} parent=1 // pred_check_branch
      %22 = sbr.rel (0) target = $region9
    $region8: #{tpu_custom_call.1} parent=1 // pred_region
      _
    $region9: #{tpu_custom_call.1} parent=1 // pred_fallthru
      _
    // Predicated region
    $region10: #{tpu_custom_call.1} parent=1 // pred_check
      _
    $region11: #{tpu_custom_call.1} parent=1 // pred_check_branch
      %24 = sbr.rel (0) target = $region13
    $region12: #{tpu_custom_call.1} parent=1 // pred_region
      _
    $region13: #{tpu_custom_call.1} parent=1 // pred_fallthru
      _
    // Predicated region
    $region14: #{tpu_custom_call.1} parent=1 // pred_check
      _
    $region15: #{tpu_custom_call.1} parent=1 // pred_check_branch
      %26 = sbr.rel (0) target = $region17
    $region16: #{tpu_custom_call.1} parent=1 // pred_region
      _
    $region17: #{tpu_custom_call.1} parent=1 // pred_fallthru
      _
    // Predicated region
    $region18: #{tpu_custom_call.1} parent=1 // pred_check
      _
    $region19: #{tpu_custom_call.1} parent=1 // pred_check_branch
      %28 = sbr.rel (0) target = $region21
    $region20: #{tpu_custom_call.1} parent=1 // pred_region
      _
    $region21: #{tpu_custom_call.1} parent=1 // pred_fallthru
      _
    // Predicated region
    $region22: #{tpu_custom_call.1} parent=1 // pred_check
      _
    $region23: #{tpu_custom_call.1} parent=1 // pred_check_branch
      %30 = sbr.rel (0) target = $region25
    $region24: #{tpu_custom_call.1} parent=1 // pred_region
      _
    $region25: #{tpu_custom_call.1} parent=1 // pred_fallthru
      _
    // Predicated region
    $region26: #{tpu_custom_call.1} parent=1 // pred_check
      _
    $region27: #{tpu_custom_call.1} parent=1 // pred_check_branch
      %32 = sbr.rel (0) target = $region29
    $region28: #{tpu_custom_call.1} parent=1 // pred_region
      _
    $region29: #{tpu_custom_call.1} parent=1 // pred_fallthru
      _
    // Predicated region
    $region30: #{tpu_custom_call.1} parent=1 // pred_check
      _
    $region31: #{tpu_custom_call.1} parent=1 // pred_check_branch
      %34 = sbr.rel (0) target = $region33
    $region32: #{tpu_custom_call.1} parent=1 // pred_region
      _
    $region33: #{tpu_custom_call.1} parent=1 // pred_fallthru
      _
    // Predicated region
    $region34: #{tpu_custom_call.1} parent=1 // pred_check
      _
    $region35: #{tpu_custom_call.1} parent=1 // pred_check_branch
      %36 = sbr.rel (0) target = $region37
    $region36: #{tpu_custom_call.1} parent=1 // pred_region
      _
    $region37: #{tpu_custom_call.1} parent=1 // pred_fallthru
      _
    // Predicated region
    $region38: #{tpu_custom_call.1} parent=1 // pred_check
      _
    $region39: #{tpu_custom_call.1} parent=1 // pred_check_branch
      %38 = sbr.rel (0) target = $region41
    $region40: #{tpu_custom_call.1} parent=1 // pred_region
      _
    $region41: #{tpu_custom_call.1} parent=1 // pred_fallthru
      _
    // Predicated region
    $region42: #{tpu_custom_call.1} parent=1 // pred_check
      _
    $region43: #{tpu_custom_call.1} parent=1 // pred_check_branch
      %40 = sbr.rel (0) target = $region45
    $region44: #{tpu_custom_call.1} parent=1 // pred_region
      _
    $region45: #{tpu_custom_call.1} parent=1 // pred_fallthru
      _
    %v41 = vld [vmem:[%s0] sm:$0xff]
    %v42 = vld [vmem:[%s0 + $0x8] sm:$0xff]
    %v43 = vld [vmem:[%s0 + $0x10] sm:$0xff]
    %v44 = vld [vmem:[%s0 + $0x18] sm:$0xff]
    %v45 = vld [vmem:[%s1] sm:$0xff]
    %v46 = vld [vmem:[%s1 + $0x8] sm:$0xff]
    %v47 = vld [vmem:[%s2] sm:$0xff]
    %v48 = vld [vmem:[%s2 + $0x8] sm:$0xff]
    %50 = vset.pattern.permute.xlu0 0
    %51 = vperm.xlu0 %50, %v47
    %v52 = vpop.permute.xlu0 %51
    %55 = vset.pattern.permute.xlu0 0
    %56 = vperm.xlu0 %55, %v48
    %v57 = vpop.permute.xlu0 %56
    %63 = vst [vmem:[#allocation1] ss:$2 sm:$0xff] %v41
    %s64 = scalar_lea.vmem [#allocation1], 16
    %65 = vst [vmem:[%s64] ss:$2 sm:$0xff] %v42
    %s66 = scalar_lea.vmem [#allocation1], 32
    %67 = vst [vmem:[%s66] ss:$2 sm:$0xff] %v43
    %s68 = scalar_lea.vmem [#allocation1], 48
    %69 = vst [vmem:[%s68] ss:$2 sm:$0xff] %v44
    %v70 = vld.sshfl [vmem:[#allocation1] sm:$0xff pattern:$0x75316420]
    %v71 = vld.sshfl [vmem:[#allocation1 + $0x8] sm:$0xff pattern:$0x75316420]
    %v72 = vld.sshfl [vmem:[#allocation1 + $0x10] sm:$0xff pattern:$0x75316420]
    %v73 = vld.sshfl [vmem:[#allocation1 + $0x18] sm:$0xff pattern:$0x75316420]
    %v74 = vld.sshfl [vmem:[#allocation1 + $0x20] sm:$0xff pattern:$0x75316420]
    %v75 = vld.sshfl [vmem:[#allocation1 + $0x28] sm:$0xff pattern:$0x75316420]
    %v76 = vld.sshfl [vmem:[#allocation1 + $0x30] sm:$0xff pattern:$0x75316420]
    %v77 = vld.sshfl [vmem:[#allocation1 + $0x38] sm:$0xff pattern:$0x75316420]
    %vm78 = vcmask 31744
    %v80 = vsel %vm78, %v45, 0
    %v83 = vsel %vm78, %v46, 0
    %vm85 = vcmask 1043456
    %v86 = vsel %vm85, %v70, 0
    %v88 = vsel %vm85, %v71, 0
    %v90 = vsel %vm85, %v72, 0
    %v92 = vsel %vm85, %v73, 0
    %v94 = vsel %vm85, %v74, 0
    %v96 = vsel %vm85, %v75, 0
    %v98 = vsel %vm85, %v76, 0
    %v100 = vsel %vm85, %v77, 0
    %102 = vmatpush.msra.mxu0 0.0
    %103 = vmatpush.msra.mxu0 0.0
    %104 = vmatpush.msra.mxu0 0.0
    %105 = vmatpush.msra.mxu0 0.0
    %106 = vmatpush.msra.mxu0 0.0
    %107 = vmatpush.msra.mxu0 0.0
    %108 = vmatpush.msra.mxu0 0.0
    %109 = vmatpush.msra.mxu0 0.0
    %110 = vmatpush.msra.mxu0 0.0
    %111 = vmatpush.msra.mxu0 0.0
    %112 = vmatpush.msra.mxu0 0.0
    %113 = vmatpush.msra.mxu0 0.0
    %114 = vmatpush.msra.mxu0 0.0
    %115 = vmatpush.msra.mxu0 0.0
    %116 = vmatpush.msra.mxu0 0.0
    %117 = vmatpush.msra.mxu0 %v86
    %118 = vmatmul.f32.gmra.mxu0 %v80
    %v119 = vpop.f32.mrf.mxu0
    %v120 = vadd.f32 %v52, %v119
    %121 = vmatmul.f32.gmra.mxu0 %v83
    %v122 = vpop.f32.mrf.mxu0
    %v123 = vadd.f32 %v57, %v122
    %124 = vdwg.mxu0
    %125 = vmatpush.msra.mxu0 0.0
    %126 = vmatpush.msra.mxu0 0.0
    %127 = vmatpush.msra.mxu0 0.0
    %128 = vmatpush.msra.mxu0 0.0
    %129 = vmatpush.msra.mxu0 0.0
    %130 = vmatpush.msra.mxu0 0.0
    %131 = vmatpush.msra.mxu0 0.0
    %132 = vmatpush.msra.mxu0 0.0
    %133 = vmatpush.msra.mxu0 0.0
    %134 = vmatpush.msra.mxu0 0.0
    %135 = vmatpush.msra.mxu0 0.0
    %136 = vmatpush.msra.mxu0 0.0
    %137 = vmatpush.msra.mxu0 0.0
    %138 = vmatpush.msra.mxu0 0.0
    %139 = vmatpush.msra.mxu0 0.0
    %140 = vmatpush.msra.mxu0 %v88
    %141 = vmatmul.f32.gmra.mxu0 %v80
    %v142 = vpop.f32.mrf.mxu0
    %v143 = vadd.f32 %v52, %v142
    %144 = vmatmul.f32.gmra.mxu0 %v83
    %v145 = vpop.f32.mrf.mxu0
    %v146 = vadd.f32 %v57, %v145
    %147 = vdwg.mxu0
    %148 = vmatpush.msra.mxu0 0.0
    %149 = vmatpush.msra.mxu0 0.0
    %150 = vmatpush.msra.mxu0 0.0
    %151 = vmatpush.msra.mxu0 0.0
    %152 = vmatpush.msra.mxu0 0.0
    %153 = vmatpush.msra.mxu0 0.0
    %154 = vmatpush.msra.mxu0 0.0
    %155 = vmatpush.msra.mxu0 0.0
    %156 = vmatpush.msra.mxu0 0.0
    %157 = vmatpush.msra.mxu0 0.0
    %158 = vmatpush.msra.mxu0 0.0
    %159 = vmatpush.msra.mxu0 0.0
    %160 = vmatpush.msra.mxu0 0.0
    %161 = vmatpush.msra.mxu0 0.0
    %162 = vmatpush.msra.mxu0 0.0
    %163 = vmatpush.msra.mxu0 %v90
    %164 = vmatmul.f32.gmra.mxu0 %v80
    %v165 = vpop.f32.mrf.mxu0
    %v166 = vadd.f32 %v52, %v165
    %167 = vmatmul.f32.gmra.mxu0 %v83
    %v168 = vpop.f32.mrf.mxu0
    %v169 = vadd.f32 %v57, %v168
    %170 = vdwg.mxu0
    %171 = vmatpush.msra.mxu0 0.0
    %172 = vmatpush.msra.mxu0 0.0
    %173 = vmatpush.msra.mxu0 0.0
    %174 = vmatpush.msra.mxu0 0.0
    %175 = vmatpush.msra.mxu0 0.0
    %176 = vmatpush.msra.mxu0 0.0
    %177 = vmatpush.msra.mxu0 0.0
    %178 = vmatpush.msra.mxu0 0.0
    %179 = vmatpush.msra.mxu0 0.0
    %180 = vmatpush.msra.mxu0 0.0
    %181 = vmatpush.msra.mxu0 0.0
    %182 = vmatpush.msra.mxu0 0.0
    %183 = vmatpush.msra.mxu0 0.0
    %184 = vmatpush.msra.mxu0 0.0
    %185 = vmatpush.msra.mxu0 0.0
    %186 = vmatpush.msra.mxu0 %v92
    %187 = vmatmul.f32.gmra.mxu0 %v80
    %v188 = vpop.f32.mrf.mxu0
    %v189 = vadd.f32 %v52, %v188
    %190 = vmatmul.f32.gmra.mxu0 %v83
    %v191 = vpop.f32.mrf.mxu0
    %v192 = vadd.f32 %v57, %v191
    %193 = vdwg.mxu0
    %194 = vmatpush.msra.mxu0 0.0
    %195 = vmatpush.msra.mxu0 0.0
    %196 = vmatpush.msra.mxu0 0.0
    %197 = vmatpush.msra.mxu0 0.0
    %198 = vmatpush.msra.mxu0 0.0
    %199 = vmatpush.msra.mxu0 0.0
    %200 = vmatpush.msra.mxu0 0.0
    %201 = vmatpush.msra.mxu0 0.0
    %202 = vmatpush.msra.mxu0 0.0
    %203 = vmatpush.msra.mxu0 0.0
    %204 = vmatpush.msra.mxu0 0.0
    %205 = vmatpush.msra.mxu0 0.0
    %206 = vmatpush.msra.mxu0 0.0
    %207 = vmatpush.msra.mxu0 0.0
    %208 = vmatpush.msra.mxu0 0.0
    %209 = vmatpush.msra.mxu0 %v94
    %210 = vmatmul.f32.gmra.mxu0 %v80
    %v211 = vpop.f32.mrf.mxu0
    %v212 = vadd.f32 %v52, %v211
    %213 = vmatmul.f32.gmra.mxu0 %v83
    %v214 = vpop.f32.mrf.mxu0
    %v215 = vadd.f32 %v57, %v214
    %216 = vdwg.mxu0
    %217 = vmatpush.msra.mxu0 0.0
    %218 = vmatpush.msra.mxu0 0.0
    %219 = vmatpush.msra.mxu0 0.0
    %220 = vmatpush.msra.mxu0 0.0
    %221 = vmatpush.msra.mxu0 0.0
    %222 = vmatpush.msra.mxu0 0.0
    %223 = vmatpush.msra.mxu0 0.0
    %224 = vmatpush.msra.mxu0 0.0
    %225 = vmatpush.msra.mxu0 0.0
    %226 = vmatpush.msra.mxu0 0.0
    %227 = vmatpush.msra.mxu0 0.0
    %228 = vmatpush.msra.mxu0 0.0
    %229 = vmatpush.msra.mxu0 0.0
    %230 = vmatpush.msra.mxu0 0.0
    %231 = vmatpush.msra.mxu0 0.0
    %232 = vmatpush.msra.mxu0 %v96
    %233 = vmatmul.f32.gmra.mxu0 %v80
    %v234 = vpop.f32.mrf.mxu0
    %v235 = vadd.f32 %v52, %v234
    %236 = vmatmul.f32.gmra.mxu0 %v83
    %v237 = vpop.f32.mrf.mxu0
    %v238 = vadd.f32 %v57, %v237
    %239 = vdwg.mxu0
    %240 = vmatpush.msra.mxu0 0.0
    %241 = vmatpush.msra.mxu0 0.0
    %242 = vmatpush.msra.mxu0 0.0
    %243 = vmatpush.msra.mxu0 0.0
    %244 = vmatpush.msra.mxu0 0.0
    %245 = vmatpush.msra.mxu0 0.0
    %246 = vmatpush.msra.mxu0 0.0
    %247 = vmatpush.msra.mxu0 0.0
    %248 = vmatpush.msra.mxu0 0.0
    %249 = vmatpush.msra.mxu0 0.0
    %250 = vmatpush.msra.mxu0 0.0
    %251 = vmatpush.msra.mxu0 0.0
    %252 = vmatpush.msra.mxu0 0.0
    %253 = vmatpush.msra.mxu0 0.0
    %254 = vmatpush.msra.mxu0 0.0
    %255 = vmatpush.msra.mxu0 %v98
    %256 = vmatmul.f32.gmra.mxu0 %v80
    %v257 = vpop.f32.mrf.mxu0
    %v258 = vadd.f32 %v52, %v257
    %259 = vmatmul.f32.gmra.mxu0 %v83
    %v260 = vpop.f32.mrf.mxu0
    %v261 = vadd.f32 %v57, %v260
    %262 = vdwg.mxu0
    %263 = vmatpush.msra.mxu0 0.0
    %264 = vmatpush.msra.mxu0 0.0
    %265 = vmatpush.msra.mxu0 0.0
    %266 = vmatpush.msra.mxu0 0.0
    %267 = vmatpush.msra.mxu0 0.0
    %268 = vmatpush.msra.mxu0 0.0
    %269 = vmatpush.msra.mxu0 0.0
    %270 = vmatpush.msra.mxu0 0.0
    %271 = vmatpush.msra.mxu0 0.0
    %272 = vmatpush.msra.mxu0 0.0
    %273 = vmatpush.msra.mxu0 0.0
    %274 = vmatpush.msra.mxu0 0.0
    %275 = vmatpush.msra.mxu0 0.0
    %276 = vmatpush.msra.mxu0 0.0
    %277 = vmatpush.msra.mxu0 0.0
    %278 = vmatpush.msra.mxu0 %v100
    %279 = vmatmul.f32.gmra.mxu0 %v80
    %v280 = vpop.f32.mrf.mxu0
    %v281 = vadd.f32 %v52, %v280
    %282 = vmatmul.f32.gmra.mxu0 %v83
    %v283 = vpop.f32.mrf.mxu0
    %v284 = vadd.f32 %v57, %v283
    %285 = vdwg.mxu0
    %v286 = vmax.f32 %v120, 0.0
    %v287 = vmax.f32 %v143, 0.0
    %v288 = vmax.f32 %v166, 0.0
    %v289 = vmax.f32 %v189, 0.0
    %v290 = vmax.f32 %v212, 0.0
    %v291 = vmax.f32 %v235, 0.0
    %v292 = vmax.f32 %v258, 0.0
    %v293 = vmax.f32 %v281, 0.0
    %v294 = vmax.f32 %v123, 0.0
    %v295 = vmax.f32 %v146, 0.0
    %v296 = vmax.f32 %v169, 0.0
    %v297 = vmax.f32 %v192, 0.0
    %v298 = vmax.f32 %v215, 0.0
    %v299 = vmax.f32 %v238, 0.0
    %v300 = vmax.f32 %v261, 0.0
    %v301 = vmax.f32 %v284, 0.0
    %v302 = vld [vmem:[%s3] sm:$0xff]
    %v303 = vld [vmem:[%s3 + $0x8] sm:$0xff]
    %v304 = vld [vmem:[%s4] sm:$0xff]
    %v305 = vld [vmem:[%s4 + $0x8] sm:$0xff]
    %307 = vset.pattern.permute.xlu0 0
    %308 = vperm.xlu0 %307, %v304
    %v309 = vpop.permute.xlu0 %308
    %312 = vset.pattern.permute.xlu0 0
    %313 = vperm.xlu0 %312, %v305
    %v314 = vpop.permute.xlu0 %313
    %vm316 = vcmask 130048
    %v318 = vsel %vm316, %v302, 0
    %v321 = vsel %vm316, %v303, 0
    %323 = vmatpush.msra.mxu0 0.0
    %324 = vmatpush.msra.mxu0 0.0
    %325 = vmatpush.msra.mxu0 0.0
    %326 = vmatpush.msra.mxu0 0.0
    %327 = vmatpush.msra.mxu0 0.0
    %328 = vmatpush.msra.mxu0 0.0
    %329 = vmatpush.msra.mxu0 0.0
    %330 = vmatpush.msra.mxu0 0.0
    %331 = vmatpush.msra.mxu0 0.0
    %332 = vmatpush.msra.mxu0 0.0
    %333 = vmatpush.msra.mxu0 0.0
    %334 = vmatpush.msra.mxu0 0.0
    %335 = vmatpush.msra.mxu0 0.0
    %336 = vmatpush.msra.mxu0 0.0
    %337 = vmatpush.msra.mxu0 %v294
    %338 = vmatpush.msra.mxu0 %v286
    %339 = vmatmul.f32.gmra.mxu0 %v318
    %v340 = vpop.f32.mrf.mxu0
    %v341 = vadd.f32 %v309, %v340
    %342 = vmatmul.f32.gmra.mxu0 %v321
    %v343 = vpop.f32.mrf.mxu0
    %v344 = vadd.f32 %v314, %v343
    %345 = vdwg.mxu0
    %346 = vmatpush.msra.mxu0 0.0
    %347 = vmatpush.msra.mxu0 0.0
    %348 = vmatpush.msra.mxu0 0.0
    %349 = vmatpush.msra.mxu0 0.0
    %350 = vmatpush.msra.mxu0 0.0
    %351 = vmatpush.msra.mxu0 0.0
    %352 = vmatpush.msra.mxu0 0.0
    %353 = vmatpush.msra.mxu0 0.0
    %354 = vmatpush.msra.mxu0 0.0
    %355 = vmatpush.msra.mxu0 0.0
    %356 = vmatpush.msra.mxu0 0.0
    %357 = vmatpush.msra.mxu0 0.0
    %358 = vmatpush.msra.mxu0 0.0
    %359 = vmatpush.msra.mxu0 0.0
    %360 = vmatpush.msra.mxu0 %v295
    %361 = vmatpush.msra.mxu0 %v287
    %362 = vmatmul.f32.gmra.mxu0 %v318
    %v363 = vpop.f32.mrf.mxu0
    %v364 = vadd.f32 %v309, %v363
    %365 = vmatmul.f32.gmra.mxu0 %v321
    %v366 = vpop.f32.mrf.mxu0
    %v367 = vadd.f32 %v314, %v366
    %368 = vdwg.mxu0
    %369 = vmatpush.msra.mxu0 0.0
    %370 = vmatpush.msra.mxu0 0.0
    %371 = vmatpush.msra.mxu0 0.0
    %372 = vmatpush.msra.mxu0 0.0
    %373 = vmatpush.msra.mxu0 0.0
    %374 = vmatpush.msra.mxu0 0.0
    %375 = vmatpush.msra.mxu0 0.0
    %376 = vmatpush.msra.mxu0 0.0
    %377 = vmatpush.msra.mxu0 0.0
    %378 = vmatpush.msra.mxu0 0.0
    %379 = vmatpush.msra.mxu0 0.0
    %380 = vmatpush.msra.mxu0 0.0
    %381 = vmatpush.msra.mxu0 0.0
    %382 = vmatpush.msra.mxu0 0.0
    %383 = vmatpush.msra.mxu0 %v296
    %384 = vmatpush.msra.mxu0 %v288
    %385 = vmatmul.f32.gmra.mxu0 %v318
    %v386 = vpop.f32.mrf.mxu0
    %v387 = vadd.f32 %v309, %v386
    %388 = vmatmul.f32.gmra.mxu0 %v321
    %v389 = vpop.f32.mrf.mxu0
    %v390 = vadd.f32 %v314, %v389
    %391 = vdwg.mxu0
    %392 = vmatpush.msra.mxu0 0.0
    %393 = vmatpush.msra.mxu0 0.0
    %394 = vmatpush.msra.mxu0 0.0
    %395 = vmatpush.msra.mxu0 0.0
    %396 = vmatpush.msra.mxu0 0.0
    %397 = vmatpush.msra.mxu0 0.0
    %398 = vmatpush.msra.mxu0 0.0
    %399 = vmatpush.msra.mxu0 0.0
    %400 = vmatpush.msra.mxu0 0.0
    %401 = vmatpush.msra.mxu0 0.0
    %402 = vmatpush.msra.mxu0 0.0
    %403 = vmatpush.msra.mxu0 0.0
    %404 = vmatpush.msra.mxu0 0.0
    %405 = vmatpush.msra.mxu0 0.0
    %406 = vmatpush.msra.mxu0 %v297
    %407 = vmatpush.msra.mxu0 %v289
    %408 = vmatmul.f32.gmra.mxu0 %v318
    %v409 = vpop.f32.mrf.mxu0
    %v410 = vadd.f32 %v309, %v409
    %411 = vmatmul.f32.gmra.mxu0 %v321
    %v412 = vpop.f32.mrf.mxu0
    %v413 = vadd.f32 %v314, %v412
    %414 = vdwg.mxu0
    %415 = vmatpush.msra.mxu0 0.0
    %416 = vmatpush.msra.mxu0 0.0
    %417 = vmatpush.msra.mxu0 0.0
    %418 = vmatpush.msra.mxu0 0.0
    %419 = vmatpush.msra.mxu0 0.0
    %420 = vmatpush.msra.mxu0 0.0
    %421 = vmatpush.msra.mxu0 0.0
    %422 = vmatpush.msra.mxu0 0.0
    %423 = vmatpush.msra.mxu0 0.0
    %424 = vmatpush.msra.mxu0 0.0
    %425 = vmatpush.msra.mxu0 0.0
    %426 = vmatpush.msra.mxu0 0.0
    %427 = vmatpush.msra.mxu0 0.0
    %428 = vmatpush.msra.mxu0 0.0
    %429 = vmatpush.msra.mxu0 %v298
    %430 = vmatpush.msra.mxu0 %v290
    %431 = vmatmul.f32.gmra.mxu0 %v318
    %v432 = vpop.f32.mrf.mxu0
    %v433 = vadd.f32 %v309, %v432
    %434 = vmatmul.f32.gmra.mxu0 %v321
    %v435 = vpop.f32.mrf.mxu0
    %v436 = vadd.f32 %v314, %v435
    %437 = vdwg.mxu0
    %438 = vmatpush.msra.mxu0 0.0
    %439 = vmatpush.msra.mxu0 0.0
    %440 = vmatpush.msra.mxu0 0.0
    %441 = vmatpush.msra.mxu0 0.0
    %442 = vmatpush.msra.mxu0 0.0
    %443 = vmatpush.msra.mxu0 0.0
    %444 = vmatpush.msra.mxu0 0.0
    %445 = vmatpush.msra.mxu0 0.0
    %446 = vmatpush.msra.mxu0 0.0
    %447 = vmatpush.msra.mxu0 0.0
    %448 = vmatpush.msra.mxu0 0.0
    %449 = vmatpush.msra.mxu0 0.0
    %450 = vmatpush.msra.mxu0 0.0
    %451 = vmatpush.msra.mxu0 0.0
    %452 = vmatpush.msra.mxu0 %v299
    %453 = vmatpush.msra.mxu0 %v291
    %454 = vmatmul.f32.gmra.mxu0 %v318
    %v455 = vpop.f32.mrf.mxu0
    %v456 = vadd.f32 %v309, %v455
    %457 = vmatmul.f32.gmra.mxu0 %v321
    %v458 = vpop.f32.mrf.mxu0
    %v459 = vadd.f32 %v314, %v458
    %460 = vdwg.mxu0
    %461 = vmatpush.msra.mxu0 0.0
    %462 = vmatpush.msra.mxu0 0.0
    %463 = vmatpush.msra.mxu0 0.0
    %464 = vmatpush.msra.mxu0 0.0
    %465 = vmatpush.msra.mxu0 0.0
    %466 = vmatpush.msra.mxu0 0.0
    %467 = vmatpush.msra.mxu0 0.0
    %468 = vmatpush.msra.mxu0 0.0
    %469 = vmatpush.msra.mxu0 0.0
    %470 = vmatpush.msra.mxu0 0.0
    %471 = vmatpush.msra.mxu0 0.0
    %472 = vmatpush.msra.mxu0 0.0
    %473 = vmatpush.msra.mxu0 0.0
    %474 = vmatpush.msra.mxu0 0.0
    %475 = vmatpush.msra.mxu0 %v300
    %476 = vmatpush.msra.mxu0 %v292
    %477 = vmatmul.f32.gmra.mxu0 %v318
    %v478 = vpop.f32.mrf.mxu0
    %v479 = vadd.f32 %v309, %v478
    %480 = vmatmul.f32.gmra.mxu0 %v321
    %v481 = vpop.f32.mrf.mxu0
    %v482 = vadd.f32 %v314, %v481
    %483 = vdwg.mxu0
    %484 = vmatpush.msra.mxu0 0.0
    %485 = vmatpush.msra.mxu0 0.0
    %486 = vmatpush.msra.mxu0 0.0
    %487 = vmatpush.msra.mxu0 0.0
    %488 = vmatpush.msra.mxu0 0.0
    %489 = vmatpush.msra.mxu0 0.0
    %490 = vmatpush.msra.mxu0 0.0
    %491 = vmatpush.msra.mxu0 0.0
    %492 = vmatpush.msra.mxu0 0.0
    %493 = vmatpush.msra.mxu0 0.0
    %494 = vmatpush.msra.mxu0 0.0
    %495 = vmatpush.msra.mxu0 0.0
    %496 = vmatpush.msra.mxu0 0.0
    %497 = vmatpush.msra.mxu0 0.0
    %498 = vmatpush.msra.mxu0 %v301
    %499 = vmatpush.msra.mxu0 %v293
    %500 = vmatmul.f32.gmra.mxu0 %v318
    %v501 = vpop.f32.mrf.mxu0
    %v502 = vadd.f32 %v309, %v501
    %503 = vmatmul.f32.gmra.mxu0 %v321
    %v504 = vpop.f32.mrf.mxu0
    %v505 = vadd.f32 %v314, %v504
    %506 = vdwg.mxu0
    %v507 = vmax.f32 %v341, 0.0
    %v508 = vmax.f32 %v364, 0.0
    %v509 = vmax.f32 %v387, 0.0
    %v510 = vmax.f32 %v410, 0.0
    %v511 = vmax.f32 %v433, 0.0
    %v512 = vmax.f32 %v456, 0.0
    %v513 = vmax.f32 %v479, 0.0
    %v514 = vmax.f32 %v502, 0.0
    %v515 = vmax.f32 %v344, 0.0
    %v516 = vmax.f32 %v367, 0.0
    %v517 = vmax.f32 %v390, 0.0
    %v518 = vmax.f32 %v413, 0.0
    %v519 = vmax.f32 %v436, 0.0
    %v520 = vmax.f32 %v459, 0.0
    %v521 = vmax.f32 %v482, 0.0
    %v522 = vmax.f32 %v505, 0.0
    %v523 = vld [vmem:[%s5] sm:$0xff]
    %v524 = vld [vmem:[%s5 + $0x8] sm:$0xff]
    %v525 = vld [vmem:[%s6] sm:$0xff]
    %v526 = vld [vmem:[%s6 + $0x8] sm:$0xff]
    %528 = vset.pattern.permute.xlu0 0
    %529 = vperm.xlu0 %528, %v525
    %v530 = vpop.permute.xlu0 %529
    %533 = vset.pattern.permute.xlu0 0
    %534 = vperm.xlu0 %533, %v526
    %v535 = vpop.permute.xlu0 %534
    %v538 = vsel %vm316, %v523, 0
    %v541 = vsel %vm316, %v524, 0
    %543 = vmatpush.msra.mxu0 0.0
    %544 = vmatpush.msra.mxu0 0.0
    %545 = vmatpush.msra.mxu0 0.0
    %546 = vmatpush.msra.mxu0 0.0
    %547 = vmatpush.msra.mxu0 0.0
    %548 = vmatpush.msra.mxu0 0.0
    %549 = vmatpush.msra.mxu0 0.0
    %550 = vmatpush.msra.mxu0 0.0
    %551 = vmatpush.msra.mxu0 0.0
    %552 = vmatpush.msra.mxu0 0.0
    %553 = vmatpush.msra.mxu0 0.0
    %554 = vmatpush.msra.mxu0 0.0
    %555 = vmatpush.msra.mxu0 0.0
    %556 = vmatpush.msra.mxu0 0.0
    %557 = vmatpush.msra.mxu0 %v515
    %558 = vmatpush.msra.mxu0 %v507
    %559 = vmatmul.f32.gmra.mxu0 %v538
    %v560 = vpop.f32.mrf.mxu0
    %v561 = vadd.f32 %v530, %v560
    %562 = vmatmul.f32.gmra.mxu0 %v541
    %v563 = vpop.f32.mrf.mxu0
    %v564 = vadd.f32 %v535, %v563
    %565 = vdwg.mxu0
    %566 = vmatpush.msra.mxu0 0.0
    %567 = vmatpush.msra.mxu0 0.0
    %568 = vmatpush.msra.mxu0 0.0
    %569 = vmatpush.msra.mxu0 0.0
    %570 = vmatpush.msra.mxu0 0.0
    %571 = vmatpush.msra.mxu0 0.0
    %572 = vmatpush.msra.mxu0 0.0
    %573 = vmatpush.msra.mxu0 0.0
    %574 = vmatpush.msra.mxu0 0.0
    %575 = vmatpush.msra.mxu0 0.0
    %576 = vmatpush.msra.mxu0 0.0
    %577 = vmatpush.msra.mxu0 0.0
    %578 = vmatpush.msra.mxu0 0.0
    %579 = vmatpush.msra.mxu0 0.0
    %580 = vmatpush.msra.mxu0 %v516
    %581 = vmatpush.msra.mxu0 %v508
    %582 = vmatmul.f32.gmra.mxu0 %v538
    %v583 = vpop.f32.mrf.mxu0
    %v584 = vadd.f32 %v530, %v583
    %585 = vmatmul.f32.gmra.mxu0 %v541
    %v586 = vpop.f32.mrf.mxu0
    %v587 = vadd.f32 %v535, %v586
    %588 = vdwg.mxu0
    %589 = vmatpush.msra.mxu0 0.0
    %590 = vmatpush.msra.mxu0 0.0
    %591 = vmatpush.msra.mxu0 0.0
    %592 = vmatpush.msra.mxu0 0.0
    %593 = vmatpush.msra.mxu0 0.0
    %594 = vmatpush.msra.mxu0 0.0
    %595 = vmatpush.msra.mxu0 0.0
    %596 = vmatpush.msra.mxu0 0.0
    %597 = vmatpush.msra.mxu0 0.0
    %598 = vmatpush.msra.mxu0 0.0
    %599 = vmatpush.msra.mxu0 0.0
    %600 = vmatpush.msra.mxu0 0.0
    %601 = vmatpush.msra.mxu0 0.0
    %602 = vmatpush.msra.mxu0 0.0
    %603 = vmatpush.msra.mxu0 %v517
    %604 = vmatpush.msra.mxu0 %v509
    %605 = vmatmul.f32.gmra.mxu0 %v538
    %v606 = vpop.f32.mrf.mxu0
    %v607 = vadd.f32 %v530, %v606
    %608 = vmatmul.f32.gmra.mxu0 %v541
    %v609 = vpop.f32.mrf.mxu0
    %v610 = vadd.f32 %v535, %v609
    %611 = vdwg.mxu0
    %612 = vmatpush.msra.mxu0 0.0
    %613 = vmatpush.msra.mxu0 0.0
    %614 = vmatpush.msra.mxu0 0.0
    %615 = vmatpush.msra.mxu0 0.0
    %616 = vmatpush.msra.mxu0 0.0
    %617 = vmatpush.msra.mxu0 0.0
    %618 = vmatpush.msra.mxu0 0.0
    %619 = vmatpush.msra.mxu0 0.0
    %620 = vmatpush.msra.mxu0 0.0
    %621 = vmatpush.msra.mxu0 0.0
    %622 = vmatpush.msra.mxu0 0.0
    %623 = vmatpush.msra.mxu0 0.0
    %624 = vmatpush.msra.mxu0 0.0
    %625 = vmatpush.msra.mxu0 0.0
    %626 = vmatpush.msra.mxu0 %v518
    %627 = vmatpush.msra.mxu0 %v510
    %628 = vmatmul.f32.gmra.mxu0 %v538
    %v629 = vpop.f32.mrf.mxu0
    %v630 = vadd.f32 %v530, %v629
    %631 = vmatmul.f32.gmra.mxu0 %v541
    %v632 = vpop.f32.mrf.mxu0
    %v633 = vadd.f32 %v535, %v632
    %634 = vdwg.mxu0
    %635 = vmatpush.msra.mxu0 0.0
    %636 = vmatpush.msra.mxu0 0.0
    %637 = vmatpush.msra.mxu0 0.0
    %638 = vmatpush.msra.mxu0 0.0
    %639 = vmatpush.msra.mxu0 0.0
    %640 = vmatpush.msra.mxu0 0.0
    %641 = vmatpush.msra.mxu0 0.0
    %642 = vmatpush.msra.mxu0 0.0
    %643 = vmatpush.msra.mxu0 0.0
    %644 = vmatpush.msra.mxu0 0.0
    %645 = vmatpush.msra.mxu0 0.0
    %646 = vmatpush.msra.mxu0 0.0
    %647 = vmatpush.msra.mxu0 0.0
    %648 = vmatpush.msra.mxu0 0.0
    %649 = vmatpush.msra.mxu0 %v519
    %650 = vmatpush.msra.mxu0 %v511
    %651 = vmatmul.f32.gmra.mxu0 %v538
    %v652 = vpop.f32.mrf.mxu0
    %v653 = vadd.f32 %v530, %v652
    %654 = vmatmul.f32.gmra.mxu0 %v541
    %v655 = vpop.f32.mrf.mxu0
    %v656 = vadd.f32 %v535, %v655
    %657 = vdwg.mxu0
    %658 = vmatpush.msra.mxu0 0.0
    %659 = vmatpush.msra.mxu0 0.0
    %660 = vmatpush.msra.mxu0 0.0
    %661 = vmatpush.msra.mxu0 0.0
    %662 = vmatpush.msra.mxu0 0.0
    %663 = vmatpush.msra.mxu0 0.0
    %664 = vmatpush.msra.mxu0 0.0
    %665 = vmatpush.msra.mxu0 0.0
    %666 = vmatpush.msra.mxu0 0.0
    %667 = vmatpush.msra.mxu0 0.0
    %668 = vmatpush.msra.mxu0 0.0
    %669 = vmatpush.msra.mxu0 0.0
    %670 = vmatpush.msra.mxu0 0.0
    %671 = vmatpush.msra.mxu0 0.0
    %672 = vmatpush.msra.mxu0 %v520
    %673 = vmatpush.msra.mxu0 %v512
    %674 = vmatmul.f32.gmra.mxu0 %v538
    %v675 = vpop.f32.mrf.mxu0
    %v676 = vadd.f32 %v530, %v675
    %677 = vmatmul.f32.gmra.mxu0 %v541
    %v678 = vpop.f32.mrf.mxu0
    %v679 = vadd.f32 %v535, %v678
    %680 = vdwg.mxu0
    %681 = vmatpush.msra.mxu0 0.0
    %682 = vmatpush.msra.mxu0 0.0
    %683 = vmatpush.msra.mxu0 0.0
    %684 = vmatpush.msra.mxu0 0.0
    %685 = vmatpush.msra.mxu0 0.0
    %686 = vmatpush.msra.mxu0 0.0
    %687 = vmatpush.msra.mxu0 0.0
    %688 = vmatpush.msra.mxu0 0.0
    %689 = vmatpush.msra.mxu0 0.0
    %690 = vmatpush.msra.mxu0 0.0
    %691 = vmatpush.msra.mxu0 0.0
    %692 = vmatpush.msra.mxu0 0.0
    %693 = vmatpush.msra.mxu0 0.0
    %694 = vmatpush.msra.mxu0 0.0
    %695 = vmatpush.msra.mxu0 %v521
    %696 = vmatpush.msra.mxu0 %v513
    %697 = vmatmul.f32.gmra.mxu0 %v538
    %v698 = vpop.f32.mrf.mxu0
    %v699 = vadd.f32 %v530, %v698
    %700 = vmatmul.f32.gmra.mxu0 %v541
    %v701 = vpop.f32.mrf.mxu0
    %v702 = vadd.f32 %v535, %v701
    %703 = vdwg.mxu0
    %704 = vmatpush.msra.mxu0 0.0
    %705 = vmatpush.msra.mxu0 0.0
    %706 = vmatpush.msra.mxu0 0.0
    %707 = vmatpush.msra.mxu0 0.0
    %708 = vmatpush.msra.mxu0 0.0
    %709 = vmatpush.msra.mxu0 0.0
    %710 = vmatpush.msra.mxu0 0.0
    %711 = vmatpush.msra.mxu0 0.0
    %712 = vmatpush.msra.mxu0 0.0
    %713 = vmatpush.msra.mxu0 0.0
    %714 = vmatpush.msra.mxu0 0.0
    %715 = vmatpush.msra.mxu0 0.0
    %716 = vmatpush.msra.mxu0 0.0
    %717 = vmatpush.msra.mxu0 0.0
    %718 = vmatpush.msra.mxu0 %v522
    %719 = vmatpush.msra.mxu0 %v514
    %720 = vmatmul.f32.gmra.mxu0 %v538
    %v721 = vpop.f32.mrf.mxu0
    %v722 = vadd.f32 %v530, %v721
    %723 = vmatmul.f32.gmra.mxu0 %v541
    %v724 = vpop.f32.mrf.mxu0
    %v725 = vadd.f32 %v535, %v724
    %726 = vdwg.mxu0
    %v727 = vmax.f32 %v561, 0.0
    %v728 = vmax.f32 %v584, 0.0
    %v729 = vmax.f32 %v607, 0.0
    %v730 = vmax.f32 %v630, 0.0
    %v731 = vmax.f32 %v653, 0.0
    %v732 = vmax.f32 %v676, 0.0
    %v733 = vmax.f32 %v699, 0.0
    %v734 = vmax.f32 %v722, 0.0
    %v735 = vmax.f32 %v564, 0.0
    %v736 = vmax.f32 %v587, 0.0
    %v737 = vmax.f32 %v610, 0.0
    %v738 = vmax.f32 %v633, 0.0
    %v739 = vmax.f32 %v656, 0.0
    %v740 = vmax.f32 %v679, 0.0
    %v741 = vmax.f32 %v702, 0.0
    %v742 = vmax.f32 %v725, 0.0
    %v743 = vld [vmem:[%s7] sm:$0xff]
    %v744 = vld [vmem:[%s7 + $0x8] sm:$0xff]
    %v745 = vld [vmem:[%s8] sm:$0xff]
    %v746 = vld [vmem:[%s8 + $0x8] sm:$0xff]
    %748 = vset.pattern.permute.xlu0 0
    %749 = vperm.xlu0 %748, %v745
    %v750 = vpop.permute.xlu0 %749
    %753 = vset.pattern.permute.xlu0 0
    %754 = vperm.xlu0 %753, %v746
    %v755 = vpop.permute.xlu0 %754
    %v758 = vsel %vm316, %v743, 0
    %v761 = vsel %vm316, %v744, 0
    %763 = vmatpush.msra.mxu0 0.0
    %764 = vmatpush.msra.mxu0 0.0
    %765 = vmatpush.msra.mxu0 0.0
    %766 = vmatpush.msra.mxu0 0.0
    %767 = vmatpush.msra.mxu0 0.0
    %768 = vmatpush.msra.mxu0 0.0
    %769 = vmatpush.msra.mxu0 0.0
    %770 = vmatpush.msra.mxu0 0.0
    %771 = vmatpush.msra.mxu0 0.0
    %772 = vmatpush.msra.mxu0 0.0
    %773 = vmatpush.msra.mxu0 0.0
    %774 = vmatpush.msra.mxu0 0.0
    %775 = vmatpush.msra.mxu0 0.0
    %776 = vmatpush.msra.mxu0 0.0
    %777 = vmatpush.msra.mxu0 %v735
    %778 = vmatpush.msra.mxu0 %v727
    %779 = vmatmul.f32.gmra.mxu0 %v758
    %v780 = vpop.f32.mrf.mxu0
    %v781 = vadd.f32 %v750, %v780
    %782 = vmatmul.f32.gmra.mxu0 %v761
    %v783 = vpop.f32.mrf.mxu0
    %v784 = vadd.f32 %v755, %v783
    %785 = vdwg.mxu0
    %786 = vmatpush.msra.mxu0 0.0
    %787 = vmatpush.msra.mxu0 0.0
    %788 = vmatpush.msra.mxu0 0.0
    %789 = vmatpush.msra.mxu0 0.0
    %790 = vmatpush.msra.mxu0 0.0
    %791 = vmatpush.msra.mxu0 0.0
    %792 = vmatpush.msra.mxu0 0.0
    %793 = vmatpush.msra.mxu0 0.0
    %794 = vmatpush.msra.mxu0 0.0
    %795 = vmatpush.msra.mxu0 0.0
    %796 = vmatpush.msra.mxu0 0.0
    %797 = vmatpush.msra.mxu0 0.0
    %798 = vmatpush.msra.mxu0 0.0
    %799 = vmatpush.msra.mxu0 0.0
    %800 = vmatpush.msra.mxu0 %v736
    %801 = vmatpush.msra.mxu0 %v728
    %802 = vmatmul.f32.gmra.mxu0 %v758
    %v803 = vpop.f32.mrf.mxu0
    %v804 = vadd.f32 %v750, %v803
    %805 = vmatmul.f32.gmra.mxu0 %v761
    %v806 = vpop.f32.mrf.mxu0
    %v807 = vadd.f32 %v755, %v806
    %808 = vdwg.mxu0
    %809 = vmatpush.msra.mxu0 0.0
    %810 = vmatpush.msra.mxu0 0.0
    %811 = vmatpush.msra.mxu0 0.0
    %812 = vmatpush.msra.mxu0 0.0
    %813 = vmatpush.msra.mxu0 0.0
    %814 = vmatpush.msra.mxu0 0.0
    %815 = vmatpush.msra.mxu0 0.0
    %816 = vmatpush.msra.mxu0 0.0
    %817 = vmatpush.msra.mxu0 0.0
    %818 = vmatpush.msra.mxu0 0.0
    %819 = vmatpush.msra.mxu0 0.0
    %820 = vmatpush.msra.mxu0 0.0
    %821 = vmatpush.msra.mxu0 0.0
    %822 = vmatpush.msra.mxu0 0.0
    %823 = vmatpush.msra.mxu0 %v737
    %824 = vmatpush.msra.mxu0 %v729
    %825 = vmatmul.f32.gmra.mxu0 %v758
    %v826 = vpop.f32.mrf.mxu0
    %v827 = vadd.f32 %v750, %v826
    %828 = vmatmul.f32.gmra.mxu0 %v761
    %v829 = vpop.f32.mrf.mxu0
    %v830 = vadd.f32 %v755, %v829
    %831 = vdwg.mxu0
    %832 = vmatpush.msra.mxu0 0.0
    %833 = vmatpush.msra.mxu0 0.0
    %834 = vmatpush.msra.mxu0 0.0
    %835 = vmatpush.msra.mxu0 0.0
    %836 = vmatpush.msra.mxu0 0.0
    %837 = vmatpush.msra.mxu0 0.0
    %838 = vmatpush.msra.mxu0 0.0
    %839 = vmatpush.msra.mxu0 0.0
    %840 = vmatpush.msra.mxu0 0.0
    %841 = vmatpush.msra.mxu0 0.0
    %842 = vmatpush.msra.mxu0 0.0
    %843 = vmatpush.msra.mxu0 0.0
    %844 = vmatpush.msra.mxu0 0.0
    %845 = vmatpush.msra.mxu0 0.0
    %846 = vmatpush.msra.mxu0 %v738
    %847 = vmatpush.msra.mxu0 %v730
    %848 = vmatmul.f32.gmra.mxu0 %v758
    %v849 = vpop.f32.mrf.mxu0
    %v850 = vadd.f32 %v750, %v849
    %851 = vmatmul.f32.gmra.mxu0 %v761
    %v852 = vpop.f32.mrf.mxu0
    %v853 = vadd.f32 %v755, %v852
    %854 = vdwg.mxu0
    %855 = vmatpush.msra.mxu0 0.0
    %856 = vmatpush.msra.mxu0 0.0
    %857 = vmatpush.msra.mxu0 0.0
    %858 = vmatpush.msra.mxu0 0.0
    %859 = vmatpush.msra.mxu0 0.0
    %860 = vmatpush.msra.mxu0 0.0
    %861 = vmatpush.msra.mxu0 0.0
    %862 = vmatpush.msra.mxu0 0.0
    %863 = vmatpush.msra.mxu0 0.0
    %864 = vmatpush.msra.mxu0 0.0
    %865 = vmatpush.msra.mxu0 0.0
    %866 = vmatpush.msra.mxu0 0.0
    %867 = vmatpush.msra.mxu0 0.0
    %868 = vmatpush.msra.mxu0 0.0
    %869 = vmatpush.msra.mxu0 %v739
    %870 = vmatpush.msra.mxu0 %v731
    %871 = vmatmul.f32.gmra.mxu0 %v758
    %v872 = vpop.f32.mrf.mxu0
    %v873 = vadd.f32 %v750, %v872
    %874 = vmatmul.f32.gmra.mxu0 %v761
    %v875 = vpop.f32.mrf.mxu0
    %v876 = vadd.f32 %v755, %v875
    %877 = vdwg.mxu0
    %878 = vmatpush.msra.mxu0 0.0
    %879 = vmatpush.msra.mxu0 0.0
    %880 = vmatpush.msra.mxu0 0.0
    %881 = vmatpush.msra.mxu0 0.0
    %882 = vmatpush.msra.mxu0 0.0
    %883 = vmatpush.msra.mxu0 0.0
    %884 = vmatpush.msra.mxu0 0.0
    %885 = vmatpush.msra.mxu0 0.0
    %886 = vmatpush.msra.mxu0 0.0
    %887 = vmatpush.msra.mxu0 0.0
    %888 = vmatpush.msra.mxu0 0.0
    %889 = vmatpush.msra.mxu0 0.0
    %890 = vmatpush.msra.mxu0 0.0
    %891 = vmatpush.msra.mxu0 0.0
    %892 = vmatpush.msra.mxu0 %v740
    %893 = vmatpush.msra.mxu0 %v732
    %894 = vmatmul.f32.gmra.mxu0 %v758
    %v895 = vpop.f32.mrf.mxu0
    %v896 = vadd.f32 %v750, %v895
    %897 = vmatmul.f32.gmra.mxu0 %v761
    %v898 = vpop.f32.mrf.mxu0
    %v899 = vadd.f32 %v755, %v898
    %900 = vdwg.mxu0
    %901 = vmatpush.msra.mxu0 0.0
    %902 = vmatpush.msra.mxu0 0.0
    %903 = vmatpush.msra.mxu0 0.0
    %904 = vmatpush.msra.mxu0 0.0
    %905 = vmatpush.msra.mxu0 0.0
    %906 = vmatpush.msra.mxu0 0.0
    %907 = vmatpush.msra.mxu0 0.0
    %908 = vmatpush.msra.mxu0 0.0
    %909 = vmatpush.msra.mxu0 0.0
    %910 = vmatpush.msra.mxu0 0.0
    %911 = vmatpush.msra.mxu0 0.0
    %912 = vmatpush.msra.mxu0 0.0
    %913 = vmatpush.msra.mxu0 0.0
    %914 = vmatpush.msra.mxu0 0.0
    %915 = vmatpush.msra.mxu0 %v741
    %916 = vmatpush.msra.mxu0 %v733
    %917 = vmatmul.f32.gmra.mxu0 %v758
    %v918 = vpop.f32.mrf.mxu0
    %v919 = vadd.f32 %v750, %v918
    %920 = vmatmul.f32.gmra.mxu0 %v761
    %v921 = vpop.f32.mrf.mxu0
    %v922 = vadd.f32 %v755, %v921
    %923 = vdwg.mxu0
    %924 = vmatpush.msra.mxu0 0.0
    %925 = vmatpush.msra.mxu0 0.0
    %926 = vmatpush.msra.mxu0 0.0
    %927 = vmatpush.msra.mxu0 0.0
    %928 = vmatpush.msra.mxu0 0.0
    %929 = vmatpush.msra.mxu0 0.0
    %930 = vmatpush.msra.mxu0 0.0
    %931 = vmatpush.msra.mxu0 0.0
    %932 = vmatpush.msra.mxu0 0.0
    %933 = vmatpush.msra.mxu0 0.0
    %934 = vmatpush.msra.mxu0 0.0
    %935 = vmatpush.msra.mxu0 0.0
    %936 = vmatpush.msra.mxu0 0.0
    %937 = vmatpush.msra.mxu0 0.0
    %938 = vmatpush.msra.mxu0 %v742
    %939 = vmatpush.msra.mxu0 %v734
    %940 = vmatmul.f32.gmra.mxu0 %v758
    %v941 = vpop.f32.mrf.mxu0
    %v942 = vadd.f32 %v750, %v941
    %943 = vmatmul.f32.gmra.mxu0 %v761
    %v944 = vpop.f32.mrf.mxu0
    %v945 = vadd.f32 %v755, %v944
    %946 = vdwg.mxu0
    %v947 = vmax.f32 %v781, 0.0
    %v948 = vmax.f32 %v804, 0.0
    %v949 = vmax.f32 %v827, 0.0
    %v950 = vmax.f32 %v850, 0.0
    %v951 = vmax.f32 %v873, 0.0
    %v952 = vmax.f32 %v896, 0.0
    %v953 = vmax.f32 %v919, 0.0
    %v954 = vmax.f32 %v942, 0.0
    %v955 = vmax.f32 %v784, 0.0
    %v956 = vmax.f32 %v807, 0.0
    %v957 = vmax.f32 %v830, 0.0
    %v958 = vmax.f32 %v853, 0.0
    %v959 = vmax.f32 %v876, 0.0
    %v960 = vmax.f32 %v899, 0.0
    %v961 = vmax.f32 %v922, 0.0
    %v962 = vmax.f32 %v945, 0.0
    %v963 = vld [vmem:[%s9] sm:$0x1]
    %v964 = vld [vmem:[#allocation2] sm:$0x1]
    %966 = vset.pattern.permute.xlu0 0
    %967 = vperm.xlu0 %966, %v964
    %v968 = vpop.permute.xlu0 %967
    %v970 = vperm.slane %v968, 0
    %v972 = vsel %vm316, %v963, 0
    %974 = vmatpush.msra.mxu0 0.0
    %975 = vmatpush.msra.mxu0 0.0
    %976 = vmatpush.msra.mxu0 0.0
    %977 = vmatpush.msra.mxu0 0.0
    %978 = vmatpush.msra.mxu0 0.0
    %979 = vmatpush.msra.mxu0 0.0
    %980 = vmatpush.msra.mxu0 0.0
    %981 = vmatpush.msra.mxu0 0.0
    %982 = vmatpush.msra.mxu0 0.0
    %983 = vmatpush.msra.mxu0 0.0
    %984 = vmatpush.msra.mxu0 0.0
    %985 = vmatpush.msra.mxu0 0.0
    %986 = vmatpush.msra.mxu0 0.0
    %987 = vmatpush.msra.mxu0 0.0
    %988 = vmatpush.msra.mxu0 %v955
    %989 = vmatpush.msra.mxu0 %v947
    %990 = vmatmul.f32.gmra.mxu0 %v972
    %v991 = vpop.f32.mrf.mxu0
    %v992 = vadd.f32 %v970, %v991
    %993 = vdwg.mxu0
    %994 = vmatpush.msra.mxu0 0.0
    %995 = vmatpush.msra.mxu0 0.0
    %996 = vmatpush.msra.mxu0 0.0
    %997 = vmatpush.msra.mxu0 0.0
    %998 = vmatpush.msra.mxu0 0.0
    %999 = vmatpush.msra.mxu0 0.0
    %1000 = vmatpush.msra.mxu0 0.0
    %1001 = vmatpush.msra.mxu0 0.0
    %1002 = vmatpush.msra.mxu0 0.0
    %1003 = vmatpush.msra.mxu0 0.0
    %1004 = vmatpush.msra.mxu0 0.0
    %1005 = vmatpush.msra.mxu0 0.0
    %1006 = vmatpush.msra.mxu0 0.0
    %1007 = vmatpush.msra.mxu0 0.0
    %1008 = vmatpush.msra.mxu0 %v956
    %1009 = vmatpush.msra.mxu0 %v948
    %1010 = vmatmul.f32.gmra.mxu0 %v972
    %v1011 = vpop.f32.mrf.mxu0
    %v1012 = vadd.f32 %v970, %v1011
    %1013 = vdwg.mxu0
    %1014 = vmatpush.msra.mxu0 0.0
    %1015 = vmatpush.msra.mxu0 0.0
    %1016 = vmatpush.msra.mxu0 0.0
    %1017 = vmatpush.msra.mxu0 0.0
    %1018 = vmatpush.msra.mxu0 0.0
    %1019 = vmatpush.msra.mxu0 0.0
    %1020 = vmatpush.msra.mxu0 0.0
    %1021 = vmatpush.msra.mxu0 0.0
    %1022 = vmatpush.msra.mxu0 0.0
    %1023 = vmatpush.msra.mxu0 0.0
    %1024 = vmatpush.msra.mxu0 0.0
    %1025 = vmatpush.msra.mxu0 0.0
    %1026 = vmatpush.msra.mxu0 0.0
    %1027 = vmatpush.msra.mxu0 0.0
    %1028 = vmatpush.msra.mxu0 %v957
    %1029 = vmatpush.msra.mxu0 %v949
    %1030 = vmatmul.f32.gmra.mxu0 %v972
    %v1031 = vpop.f32.mrf.mxu0
    %v1032 = vadd.f32 %v970, %v1031
    %1033 = vdwg.mxu0
    %1034 = vmatpush.msra.mxu0 0.0
    %1035 = vmatpush.msra.mxu0 0.0
    %1036 = vmatpush.msra.mxu0 0.0
    %1037 = vmatpush.msra.mxu0 0.0
    %1038 = vmatpush.msra.mxu0 0.0
    %1039 = vmatpush.msra.mxu0 0.0
    %1040 = vmatpush.msra.mxu0 0.0
    %1041 = vmatpush.msra.mxu0 0.0
    %1042 = vmatpush.msra.mxu0 0.0
    %1043 = vmatpush.msra.mxu0 0.0
    %1044 = vmatpush.msra.mxu0 0.0
    %1045 = vmatpush.msra.mxu0 0.0
    %1046 = vmatpush.msra.mxu0 0.0
    %1047 = vmatpush.msra.mxu0 0.0
    %1048 = vmatpush.msra.mxu0 %v958
    %1049 = vmatpush.msra.mxu0 %v950
    %1050 = vmatmul.f32.gmra.mxu0 %v972
    %v1051 = vpop.f32.mrf.mxu0
    %v1052 = vadd.f32 %v970, %v1051
    %1053 = vdwg.mxu0
    %1054 = vmatpush.msra.mxu0 0.0
    %1055 = vmatpush.msra.mxu0 0.0
    %1056 = vmatpush.msra.mxu0 0.0
    %1057 = vmatpush.msra.mxu0 0.0
    %1058 = vmatpush.msra.mxu0 0.0
    %1059 = vmatpush.msra.mxu0 0.0
    %1060 = vmatpush.msra.mxu0 0.0
    %1061 = vmatpush.msra.mxu0 0.0
    %1062 = vmatpush.msra.mxu0 0.0
    %1063 = vmatpush.msra.mxu0 0.0
    %1064 = vmatpush.msra.mxu0 0.0
    %1065 = vmatpush.msra.mxu0 0.0
    %1066 = vmatpush.msra.mxu0 0.0
    %1067 = vmatpush.msra.mxu0 0.0
    %1068 = vmatpush.msra.mxu0 %v959
    %1069 = vmatpush.msra.mxu0 %v951
    %1070 = vmatmul.f32.gmra.mxu0 %v972
    %v1071 = vpop.f32.mrf.mxu0
    %v1072 = vadd.f32 %v970, %v1071
    %1073 = vdwg.mxu0
    %1074 = vmatpush.msra.mxu0 0.0
    %1075 = vmatpush.msra.mxu0 0.0
    %1076 = vmatpush.msra.mxu0 0.0
    %1077 = vmatpush.msra.mxu0 0.0
    %1078 = vmatpush.msra.mxu0 0.0
    %1079 = vmatpush.msra.mxu0 0.0
    %1080 = vmatpush.msra.mxu0 0.0
    %1081 = vmatpush.msra.mxu0 0.0
    %1082 = vmatpush.msra.mxu0 0.0
    %1083 = vmatpush.msra.mxu0 0.0
    %1084 = vmatpush.msra.mxu0 0.0
    %1085 = vmatpush.msra.mxu0 0.0
    %1086 = vmatpush.msra.mxu0 0.0
    %1087 = vmatpush.msra.mxu0 0.0
    %1088 = vmatpush.msra.mxu0 %v960
    %1089 = vmatpush.msra.mxu0 %v952
    %1090 = vmatmul.f32.gmra.mxu0 %v972
    %v1091 = vpop.f32.mrf.mxu0
    %v1092 = vadd.f32 %v970, %v1091
    %1093 = vdwg.mxu0
    %1094 = vmatpush.msra.mxu0 0.0
    %1095 = vmatpush.msra.mxu0 0.0
    %1096 = vmatpush.msra.mxu0 0.0
    %1097 = vmatpush.msra.mxu0 0.0
    %1098 = vmatpush.msra.mxu0 0.0
    %1099 = vmatpush.msra.mxu0 0.0
    %1100 = vmatpush.msra.mxu0 0.0
    %1101 = vmatpush.msra.mxu0 0.0
    %1102 = vmatpush.msra.mxu0 0.0
    %1103 = vmatpush.msra.mxu0 0.0
    %1104 = vmatpush.msra.mxu0 0.0
    %1105 = vmatpush.msra.mxu0 0.0
    %1106 = vmatpush.msra.mxu0 0.0
    %1107 = vmatpush.msra.mxu0 0.0
    %1108 = vmatpush.msra.mxu0 %v961
    %1109 = vmatpush.msra.mxu0 %v953
    %1110 = vmatmul.f32.gmra.mxu0 %v972
    %v1111 = vpop.f32.mrf.mxu0
    %v1112 = vadd.f32 %v970, %v1111
    %1113 = vdwg.mxu0
    %1114 = vmatpush.msra.mxu0 0.0
    %1115 = vmatpush.msra.mxu0 0.0
    %1116 = vmatpush.msra.mxu0 0.0
    %1117 = vmatpush.msra.mxu0 0.0
    %1118 = vmatpush.msra.mxu0 0.0
    %1119 = vmatpush.msra.mxu0 0.0
    %1120 = vmatpush.msra.mxu0 0.0
    %1121 = vmatpush.msra.mxu0 0.0
    %1122 = vmatpush.msra.mxu0 0.0
    %1123 = vmatpush.msra.mxu0 0.0
    %1124 = vmatpush.msra.mxu0 0.0
    %1125 = vmatpush.msra.mxu0 0.0
    %1126 = vmatpush.msra.mxu0 0.0
    %1127 = vmatpush.msra.mxu0 0.0
    %1128 = vmatpush.msra.mxu0 %v962
    %1129 = vmatpush.msra.mxu0 %v954
    %1130 = vmatmul.f32.gmra.mxu0 %v972
    %v1131 = vpop.f32.mrf.mxu0
    %v1132 = vadd.f32 %v970, %v1131
    %1133 = vdwg.mxu0
    %v1142 = vrot.slane %v1012, 7
    %v1143 = vrot.slane %v1032, 6
    %v1144 = vrot.slane %v1052, 5
    %v1145 = vrot.slane %v1072, 4
    %v1146 = vrot.slane %v1092, 3
    %v1147 = vrot.slane %v1112, 2
    %v1148 = vrot.slane %v1132, 1
    %vm1149 = vcmask 1040384
    %v1150 = vsel %vm1149, %v992, %v1142
    %vm1151 = vcmask 1042434
    %v1152 = vsel %vm1151, %v1143, %v1144
    %vm1153 = vcmask 1041408
    %v1154 = vsel %vm1153, %v1150, %v1152
    %vm1155 = vcmask 1044484
    %v1156 = vsel %vm1155, %v1145, %v1146
    %vm1157 = vcmask 1046534
    %v1158 = vsel %vm1157, %v1147, %v1148
    %vm1159 = vcmask 1045508
    %v1160 = vsel %vm1159, %v1156, %v1158
    %v1161 = vsel %vm85, %v1154, %v1160
    %1163 = vst [vmem:[#allocation3] sm:$0xff] %v1161
    // Predicated region
    $region46: #{tpu_custom_call.1} parent=1 // pred_check
      _
    $region47: #{tpu_custom_call.1} parent=1 // pred_check_branch
      %1165 = sbr.rel (0) target = $region49
    $region48: #{tpu_custom_call.1} parent=1 // pred_region
      %1167 = vsyncadd [#allocation4], 0
      %s1169 = sshll.u32 [#allocation3], 4
      %s1170 = int_to_ptr.vmem [resolvable:$true] %s1169
      %s1171 = sshll.u32 %s11, 4
      %s1172 = int_to_ptr.hbm [resolvable:$true] %s1171
      %1174 = dma.vmem_to_hbm [thread:$0]  %s1170, 128, %s1172, [#allocation4]
    $region49: #{tpu_custom_call.1} parent=1 // pred_fallthru
      _
    // Predicated region
    $region50: #{tpu_custom_call.1} parent=1 // pred_check
      _
    $region51: #{tpu_custom_call.1} parent=1 // pred_check_branch
      %1176 = sbr.rel (0) target = $region53
    $region52: #{tpu_custom_call.1} parent=1 // pred_region
      %1178 = dma.done [#allocation4], 128
    $region53: #{tpu_custom_call.1} parent=1 // pred_fallthru
      _
    %1179 = vsyncpa [#allocation4], 1

</llo_original>
